<compile_context>
chip_gen: v7x
topology: tpu7x:2x2x1
jax: 0.10.0
libtpu: 0.0.40
codegen_flags: <defaults>
</compile_context>

<pallas_src>
from functools import partial

import jax
import jax.numpy as jnp
from jax.experimental import pallas as pl
from jax.experimental.pallas import tpu as pltpu


def _mlp_kernel(alpha_ref,            # SMEM (1, 1)  PReLU slope
                x_ref,                # VMEM (TM, 4)   f32
                w1_ref, b1_ref,       # VMEM (4, 50), (1, 50)   f32
                w2_ref, b2_ref,       # VMEM (50, 100), (1, 100)  (w2 maybe bf16)
                w3_ref, b3_ref,       # VMEM (100, 2), (1, 2)     (w3 maybe bf16)
                o_ref,                # VMEM (TM, 2)   f32
                *, mm_dtype):
    a = alpha_ref[0, 0]

    # ---- layer 1 (4 -> 50): K=4, done on the VPU as broadcast multiply-adds ----
    x = x_ref[...]                    # (TM, 4)  f32
    w1 = w1_ref[...]                  # (4, 50)  f32
    h1 = (x[:, 0:1] * w1[0:1, :]
          + x[:, 1:2] * w1[1:2, :]
          + x[:, 2:3] * w1[2:3, :]
          + x[:, 3:4] * w1[3:4, :]
          + b1_ref[...])
    h1 = jnp.where(h1 > 0, h1, a * h1)            # PReLU (f32)

    # ---- layer 2 (50 -> 100): MXU, f32 accumulate ----
    h2 = jnp.dot(h1.astype(mm_dtype), w2_ref[...],
                 preferred_element_type=jnp.float32)
    h2 = h2 + b2_ref[...]
    h2 = jnp.where(h2 > 0, h2, a * h2)            # PReLU (f32)

    # ---- output layer (100 -> 2): MXU, no activation ----
    out = jnp.dot(h2.astype(mm_dtype), w3_ref[...],
                  preferred_element_type=jnp.float32)
    out = out + b3_ref[...]
    o_ref[...] = out.astype(o_ref.dtype)


def _choose_tm(B, tm):
    """Pick an effective batch tile: multiple of 8, and keep >=2 grid steps
    when B permits so v7x's two TensorCores both get work."""
    tm = max(8, (tm // 8) * 8)
    if B > 8:
        half = -(-B // 2)             # ceil(B / 2)
        half = -(-half // 8) * 8      # round up to multiple of 8
        tm = min(tm, half)
    else:
        tm = 8
    return tm


def equation_ann_forward(x, params, *, tm=1024, use_bf16=False):
    """x: (B, 4) float32. params: dict of weights/biases/prelu alpha.

    use_bf16: cast the layer-2/3 MXU operands to bfloat16 (halves vmatmul
    pushes & weight bytes); bias/PReLU and accumulation stay f32.
    """
    B, Din = x.shape
    assert Din == 4
    mm_dtype = jnp.bfloat16 if use_bf16 else jnp.float32

    tm = _choose_tm(B, tm)
    grid_b = pl.cdiv(B, tm)
    B_pad = grid_b * tm
    x = x.astype(jnp.float32)
    if B_pad != B:                                    # ragged tail: zero-pad
        x = jnp.pad(x, ((0, B_pad - B), (0, 0)))

    w1 = params["w1"].astype(jnp.float32)             # (4, 50)  stays f32 (VPU layer)
    b1r = params["b1"].reshape(1, -1).astype(jnp.float32)
    w2 = params["w2"].astype(mm_dtype)                # (50, 100)
    b2r = params["b2"].reshape(1, -1).astype(jnp.float32)
    w3 = params["w3"].astype(mm_dtype)                # (100, 2)
    b3r = params["b3"].reshape(1, -1).astype(jnp.float32)
    alpha = params["alpha"].reshape(1, 1).astype(jnp.float32)

    # Weights / biases are full-array blocks, resident across the batch grid.
    full = lambda shp: pl.BlockSpec(shp, lambda i: tuple(0 for _ in shp))

    out = pl.pallas_call(
        partial(_mlp_kernel, mm_dtype=mm_dtype),
        out_shape=jax.ShapeDtypeStruct((B_pad, 2), jnp.float32),
        grid_spec=pltpu.PrefetchScalarGridSpec(
            num_scalar_prefetch=0,
            grid=(grid_b,),
            in_specs=[
                pl.BlockSpec(memory_space=pltpu.SMEM),            # alpha
                pl.BlockSpec((tm, 4), lambda i: (i, 0)),          # x tile
                full(w1.shape), full(b1r.shape),
                full(w2.shape), full(b2r.shape),
                full(w3.shape), full(b3r.shape),
            ],
            out_specs=pl.BlockSpec((tm, 2), lambda i: (i, 0)),
        ),
        compiler_params=pltpu.CompilerParams(
            dimension_semantics=("parallel",)),
    )(alpha, x, w1, b1r, w2, b2r, w3, b3r)
    return out[:B]


def init_params(key):
    """Deterministic synthetic init matching nn.Linear/nn.PReLU shapes."""
    k1, k2, k3, k4, k5, k6 = jax.random.split(key, 6)

    def linear(kw, kb, fan_in, fan_out):
        # PyTorch-style uniform(-1/sqrt(fan_in), 1/sqrt(fan_in)); stored transposed
        bound = 1.0 / jnp.sqrt(fan_in)
        w = jax.random.uniform(kw, (fan_in, fan_out), jnp.float32, -bound, bound)
        b = jax.random.uniform(kb, (fan_out,), jnp.float32, -bound, bound)
        return w, b

    w1, b1 = linear(k1, k2, 4, 50)
    w2, b2 = linear(k3, k4, 50, 100)
    w3, b3 = linear(k5, k6, 100, 2)
    alpha = jnp.array(0.25, jnp.float32)   # nn.PReLU() default: single shared slope
    return dict(w1=w1, b1=b1, w2=w2, b2=b2, w3=w3, b3=b3, alpha=alpha)


def reference_forward(x, p):
    a = p["alpha"]
    prelu = lambda v: jnp.where(v > 0, v, a * v)
    h = prelu(x @ p["w1"] + p["b1"])
    h = prelu(h @ p["w2"] + p["b2"])
    return h @ p["w3"] + p["b3"]


if __name__ == "__main__":
    key = jax.random.PRNGKey(0)
    kx, kp = jax.random.split(key)

    params = init_params(kp)

    # f32 path, even batch (grid of 2 tiles)
    B = 16
    x = jax.random.normal(kx, (B, 4), jnp.float32)
    y = jax.block_until_ready(equation_ann_forward(x, params))
    y_ref = reference_forward(x, params)
    assert y.shape == (B, 2)
    assert jnp.allclose(y, y_ref, atol=1e-4, rtol=1e-4), "f32 mismatch vs reference"

    # ragged batch exercises pl.cdiv + tail padding
    B2 = 13
    x2 = jax.random.normal(kx, (B2, 4), jnp.float32)
    y2 = jax.block_until_ready(equation_ann_forward(x2, params))
    assert y2.shape == (B2, 2)
    assert jnp.allclose(y2, reference_forward(x2, params), atol=1e-4, rtol=1e-4), \
        "ragged-batch mismatch vs reference"

    # bf16 MXU-operand path (looser tolerance: bf16 inputs, f32 accumulation)
    y3 = jax.block_until_ready(equation_ann_forward(x, params, use_bf16=True))
    assert y3.shape == (B, 2)
    assert jnp.allclose(y3, y_ref, atol=1e-1, rtol=1e-1), "bf16 path drifted too far"

    print("KERNEL_OK")
</pallas_src>

<mosaic_0001>
module attributes {stable_mosaic.version = 11 : i64} {
  func.func @_mlp_kernel(%arg0: i32, %arg1: memref<1x1xf32, #tpu.memory_space<smem>>, %arg2: memref<8x4xf32, #tpu.memory_space<vmem>>, %arg3: memref<4x50xf32, #tpu.memory_space<vmem>>, %arg4: memref<1x50xf32, #tpu.memory_space<vmem>>, %arg5: memref<50x100xf32, #tpu.memory_space<vmem>>, %arg6: memref<1x100xf32, #tpu.memory_space<vmem>>, %arg7: memref<100x2xf32, #tpu.memory_space<vmem>>, %arg8: memref<1x2xf32, #tpu.memory_space<vmem>>, %arg9: memref<8x2xf32, #tpu.memory_space<vmem>>) attributes {dimension_semantics = [#tpu.dimension_semantics<parallel>], iteration_bounds = array<i64: 2>, scalar_prefetch = 0 : i64, scratch_operands = 0 : i64, tpu.core_type = #tpu.core_type<tc>, window_params = [{transform_indices = @transform_0, window_bounds = array<i64: 1, 1>}, {transform_indices = @transform_1, window_bounds = array<i64: 8, 4>}, {pipeline_mode = #tpu.pipeline_mode<synchronous>, transform_indices = @transform_2, window_bounds = array<i64: 4, 50>}, {pipeline_mode = #tpu.pipeline_mode<synchronous>, transform_indices = @transform_3, window_bounds = array<i64: 1, 50>}, {pipeline_mode = #tpu.pipeline_mode<synchronous>, transform_indices = @transform_4, window_bounds = array<i64: 50, 100>}, {pipeline_mode = #tpu.pipeline_mode<synchronous>, transform_indices = @transform_5, window_bounds = array<i64: 1, 100>}, {pipeline_mode = #tpu.pipeline_mode<synchronous>, transform_indices = @transform_6, window_bounds = array<i64: 100, 2>}, {pipeline_mode = #tpu.pipeline_mode<synchronous>, transform_indices = @transform_7, window_bounds = array<i64: 1, 2>}, {transform_indices = @transform_8, window_bounds = array<i64: 8, 2>}]} {
    %c0 = arith.constant 0 : index
    %c0_0 = arith.constant 0 : index
    %0 = memref.load %arg1[%c0, %c0_0] : memref<1x1xf32, #tpu.memory_space<smem>>
    %c0_1 = arith.constant 0 : index
    %c0_2 = arith.constant 0 : index
    %1 = vector.load %arg2[%c0_1, %c0_2] : memref<8x4xf32, #tpu.memory_space<vmem>>, vector<8x4xf32>
    %c0_3 = arith.constant 0 : index
    %c0_4 = arith.constant 0 : index
    %2 = vector.load %arg3[%c0_3, %c0_4] : memref<4x50xf32, #tpu.memory_space<vmem>>, vector<4x50xf32>
    %3 = vector.extract_strided_slice %1 {offsets = [0, 0], sizes = [8, 1], strides = [1, 1]} : vector<8x4xf32> to vector<8x1xf32>
    %4 = vector.extract_strided_slice %2 {offsets = [0, 0], sizes = [1, 50], strides = [1, 1]} : vector<4x50xf32> to vector<1x50xf32>
    %5 = vector.broadcast %3 : vector<8x1xf32> to vector<8x50xf32>
    %6 = vector.broadcast %4 : vector<1x50xf32> to vector<8x50xf32>
    %7 = arith.mulf %5, %6 : vector<8x50xf32>
    %8 = vector.extract_strided_slice %1 {offsets = [0, 1], sizes = [8, 1], strides = [1, 1]} : vector<8x4xf32> to vector<8x1xf32>
    %9 = vector.extract_strided_slice %2 {offsets = [1, 0], sizes = [1, 50], strides = [1, 1]} : vector<4x50xf32> to vector<1x50xf32>
    %10 = vector.broadcast %8 : vector<8x1xf32> to vector<8x50xf32>
    %11 = vector.broadcast %9 : vector<1x50xf32> to vector<8x50xf32>
    %12 = arith.mulf %10, %11 : vector<8x50xf32>
    %13 = arith.addf %7, %12 : vector<8x50xf32>
    %14 = vector.extract_strided_slice %1 {offsets = [0, 2], sizes = [8, 1], strides = [1, 1]} : vector<8x4xf32> to vector<8x1xf32>
    %15 = vector.extract_strided_slice %2 {offsets = [2, 0], sizes = [1, 50], strides = [1, 1]} : vector<4x50xf32> to vector<1x50xf32>
    %16 = vector.broadcast %14 : vector<8x1xf32> to vector<8x50xf32>
    %17 = vector.broadcast %15 : vector<1x50xf32> to vector<8x50xf32>
    %18 = arith.mulf %16, %17 : vector<8x50xf32>
    %19 = arith.addf %13, %18 : vector<8x50xf32>
    %20 = vector.extract_strided_slice %1 {offsets = [0, 3], sizes = [8, 1], strides = [1, 1]} : vector<8x4xf32> to vector<8x1xf32>
    %21 = vector.extract_strided_slice %2 {offsets = [3, 0], sizes = [1, 50], strides = [1, 1]} : vector<4x50xf32> to vector<1x50xf32>
    %22 = vector.broadcast %20 : vector<8x1xf32> to vector<8x50xf32>
    %23 = vector.broadcast %21 : vector<1x50xf32> to vector<8x50xf32>
    %24 = arith.mulf %22, %23 : vector<8x50xf32>
    %25 = arith.addf %19, %24 : vector<8x50xf32>
    %c0_5 = arith.constant 0 : index
    %c0_6 = arith.constant 0 : index
    %26 = vector.load %arg4[%c0_5, %c0_6] : memref<1x50xf32, #tpu.memory_space<vmem>>, vector<1x50xf32>
    %27 = vector.broadcast %26 : vector<1x50xf32> to vector<8x50xf32>
    %28 = arith.addf %25, %27 : vector<8x50xf32>
    %cst = arith.constant 0.000000e+00 : f32
    %29 = vector.broadcast %cst : f32 to vector<8x50xf32>
    %30 = arith.cmpf ogt, %28, %29 : vector<8x50xf32>
    %31 = vector.broadcast %0 : f32 to vector<8x50xf32>
    %32 = arith.mulf %31, %28 : vector<8x50xf32>
    %33 = arith.select %30, %28, %32 : vector<8x50xi1>, vector<8x50xf32>
    %c0_7 = arith.constant 0 : index
    %c0_8 = arith.constant 0 : index
    %34 = vector.load %arg5[%c0_7, %c0_8] : memref<50x100xf32, #tpu.memory_space<vmem>>, vector<50x100xf32>
    %cst_9 = arith.constant dense<0.000000e+00> : vector<8x100xf32>
    %35 = tpu.matmul %33, %34, %cst_9 {dimension_numbers = #tpu.dot_dimension_numbers<[1], [0], [0], [1], [0, 0, 1, 1], [], []>} : vector<8x50xf32>, vector<50x100xf32>, vector<8x100xf32> -> vector<8x100xf32>
    %c0_10 = arith.constant 0 : index
    %c0_11 = arith.constant 0 : index
    %36 = vector.load %arg6[%c0_10, %c0_11] : memref<1x100xf32, #tpu.memory_space<vmem>>, vector<1x100xf32>
    %37 = vector.broadcast %36 : vector<1x100xf32> to vector<8x100xf32>
    %38 = arith.addf %35, %37 : vector<8x100xf32>
    %cst_12 = arith.constant 0.000000e+00 : f32
    %39 = vector.broadcast %cst_12 : f32 to vector<8x100xf32>
    %40 = arith.cmpf ogt, %38, %39 : vector<8x100xf32>
    %41 = vector.broadcast %0 : f32 to vector<8x100xf32>
    %42 = arith.mulf %41, %38 : vector<8x100xf32>
    %43 = arith.select %40, %38, %42 : vector<8x100xi1>, vector<8x100xf32>
    %c0_13 = arith.constant 0 : index
    %c0_14 = arith.constant 0 : index
    %44 = vector.load %arg7[%c0_13, %c0_14] : memref<100x2xf32, #tpu.memory_space<vmem>>, vector<100x2xf32>
    %cst_15 = arith.constant dense<0.000000e+00> : vector<8x2xf32>
    %45 = tpu.matmul %43, %44, %cst_15 {dimension_numbers = #tpu.dot_dimension_numbers<[1], [0], [0], [1], [0, 0, 1, 1], [], []>} : vector<8x100xf32>, vector<100x2xf32>, vector<8x2xf32> -> vector<8x2xf32>
    %c0_16 = arith.constant 0 : index
    %c0_17 = arith.constant 0 : index
    %46 = vector.load %arg8[%c0_16, %c0_17] : memref<1x2xf32, #tpu.memory_space<vmem>>, vector<1x2xf32>
    %47 = vector.broadcast %46 : vector<1x2xf32> to vector<8x2xf32>
    %48 = arith.addf %45, %47 : vector<8x2xf32>
    %c0_18 = arith.constant 0 : index
    %c0_19 = arith.constant 0 : index
    %49 = vector.load %arg9[%c0_18, %c0_19] : memref<8x2xf32, #tpu.memory_space<vmem>>, vector<8x2xf32>
    tpu.vector_store %arg9[%c0_18, %c0_19], %48 {strides = array<i32>} : memref<8x2xf32, #tpu.memory_space<vmem>>, vector<8x2xf32>,
    return
  }
  func.func @transform_0(%arg0: i32) -> (i32, i32) {
    %c0_i32 = arith.constant 0 : i32
    %c0_i32_0 = arith.constant 0 : i32
    %c0_i32_1 = arith.constant 0 : i32
    return %c0_i32, %c0_i32_0 : i32, i32
  }
  func.func @transform_1(%arg0: i32) -> (i32, i32) {
    %c0_i32 = arith.constant 0 : i32
    %c0_i32_0 = arith.constant 0 : i32
    return %arg0, %c0_i32 : i32, i32
  }
  func.func @transform_2(%arg0: i32) -> (i32, i32) {
    %c0_i32 = arith.constant 0 : i32
    %c0_i32_0 = arith.constant 0 : i32
    %c0_i32_1 = arith.constant 0 : i32
    return %c0_i32, %c0_i32_0 : i32, i32
  }
  func.func @transform_3(%arg0: i32) -> (i32, i32) {
    %c0_i32 = arith.constant 0 : i32
    %c0_i32_0 = arith.constant 0 : i32
    %c0_i32_1 = arith.constant 0 : i32
    return %c0_i32, %c0_i32_0 : i32, i32
  }
  func.func @transform_4(%arg0: i32) -> (i32, i32) {
    %c0_i32 = arith.constant 0 : i32
    %c0_i32_0 = arith.constant 0 : i32
    %c0_i32_1 = arith.constant 0 : i32
    return %c0_i32, %c0_i32_0 : i32, i32
  }
  func.func @transform_5(%arg0: i32) -> (i32, i32) {
    %c0_i32 = arith.constant 0 : i32
    %c0_i32_0 = arith.constant 0 : i32
    %c0_i32_1 = arith.constant 0 : i32
    return %c0_i32, %c0_i32_0 : i32, i32
  }
  func.func @transform_6(%arg0: i32) -> (i32, i32) {
    %c0_i32 = arith.constant 0 : i32
    %c0_i32_0 = arith.constant 0 : i32
    %c0_i32_1 = arith.constant 0 : i32
    return %c0_i32, %c0_i32_0 : i32, i32
  }
  func.func @transform_7(%arg0: i32) -> (i32, i32) {
    %c0_i32 = arith.constant 0 : i32
    %c0_i32_0 = arith.constant 0 : i32
    %c0_i32_1 = arith.constant 0 : i32
    return %c0_i32, %c0_i32_0 : i32, i32
  }
  func.func @transform_8(%arg0: i32) -> (i32, i32) {
    %c0_i32 = arith.constant 0 : i32
    %c0_i32_0 = arith.constant 0 : i32
    return %arg0, %c0_i32 : i32, i32
  }
}

</mosaic_0001>

<llo_original>
// kernel: tpu_custom_call.1
$region0: #{tpu_custom_call.1}
  #allocation0 [shape = 'u32[]', space=smem, size = 0x4, offset = 0x4, fixed_abs, tag = 'smem constant byte address 0x4 - core index']
  #allocation1 [shape = 'u32[144,128]{1,0:T(1,128)}', space=vmem, size = 0x12000, scoped, tag = 'internal scratch']
  #allocation2 [shape = 'f32[1,1]{1,0:T(1,128)S(6)}', space=smem, size = 0x200, scoped, tag = 'scoped memory for tpu_custom_call.1']
  %s0 = inlined_call_operand.<no memory space> [shape: f32[1,1], index: 0, kind: input, shape index: {}]
  %s1 = inlined_call_operand.vmem [shape: f32[16,4], index: 1, kind: input, shape index: {}]
  %s2 = inlined_call_operand.vmem [shape: f32[4,50], index: 2, kind: input, shape index: {}]
  %s3 = inlined_call_operand.vmem [shape: f32[1,50], index: 3, kind: input, shape index: {}]
  %s4 = inlined_call_operand.vmem [shape: f32[50,100], index: 4, kind: input, shape index: {}]
  %s5 = inlined_call_operand.vmem [shape: f32[1,100], index: 5, kind: input, shape index: {}]
  %s6 = inlined_call_operand.vmem [shape: f32[100,2], index: 6, kind: input, shape index: {}]
  %s7 = inlined_call_operand.vmem [shape: f32[1,2], index: 7, kind: input, shape index: {}]
  %s8 = inlined_call_operand.vmem [shape: f32[16,2], index: 8, kind: output, shape index: {}]
  %s9 = sld [smem:[#allocation0]]
  $region65: #{tpu_custom_call.1} parent=0
    _
  %s11 = ssub.s32 1, %s9
  %s12 = scalar_select 0, %s11, %s9
  %13 = sst [smem:[#allocation2]] %s0
  loop: start=0, step=1, limit=4
  $region2: #{tpu_custom_call.1} parent=0 // loop_pre_header
    _
  $region3: #{tpu_custom_call.1} parent=0 // loop_header
    %s15 = sphi 0, %s19
    %p16 = scmp.ge.s32.totalorder %s15, 4
    %s23 = sphi 0, %s23
    %s25 = sphi 0, %s23
    %s26 = sphi 0, %s25
    %s40 = sphi 0, %s26
    %s46 = sphi 0, %s48
    %s49 = sphi 0, %s46
    %s50 = sphi 0, %s49
    %s66 = sphi 0, %s50
    %s70 = sphi 0, %s70
    %s72 = sphi 0, %s70
    %s73 = sphi 0, %s72
    %s87 = sphi 0, %s73
    %s91 = sphi 0, %s91
    %s93 = sphi 0, %s91
    %s94 = sphi 0, %s93
    %s108 = sphi 0, %s94
    %s112 = sphi 0, %s112
    %s114 = sphi 0, %s112
    %s115 = sphi 0, %s114
    %s129 = sphi 0, %s115
    %s133 = sphi 0, %s133
    %s135 = sphi 0, %s133
    %s136 = sphi 0, %s135
    %s150 = sphi 0, %s136
    %s154 = sphi 0, %s154
    %s156 = sphi 0, %s154
    %s157 = sphi 0, %s156
    %s171 = sphi 0, %s157
    %s175 = sphi 0, %s175
    %s177 = sphi 0, %s175
    %s178 = sphi 0, %s177
    %s192 = sphi 0, %s178
    %s198 = sphi 0, %s200
    %s201 = sphi 0, %s198
    %s202 = sphi 0, %s201
    %s218 = sphi 0, %s202
  $region4: #{tpu_custom_call.1} parent=0 // loop_header_branch
    %18 = sbr.rel (%p16) target = $region8
  $region5: #{tpu_custom_call.1} parent=0 // loop_body
    %s20 = ssub.s32 %s15, 1
    %s21 = ssub.s32 %s15, 2
    %s22 = sadd.s32 %s15, 1
    %s24 = sadd.s32 %s23, 1
    %p27 = scmp.eq.s32.totalorder %s15, 1
    %p28 = scmp.ne.s32.totalorder %s23, %s25
    %p29 = scmp.eq.s32.totalorder %s15, 0
    %p30 = por %p28, %p29
    %p31 = scmp.ne.s32.totalorder %s23, %s25
    %p32 = scmp.eq.s32.totalorder %s20, 1
    %p33 = por %p31, %p32
    %p34 = scmp.ne.s32.totalorder %s25, %s26
    %p35 = scmp.eq.s32.totalorder %s20, 0
    %p36 = por %p34, %p35
    %p37 = scmp.ne.s32.totalorder %s25, %s26
    %p38 = scmp.eq.s32.totalorder %s21, 1
    %p39 = por %p37, %p38
    %p41 = scmp.ne.s32.totalorder %s26, %s40
    %p42 = scmp.eq.s32.totalorder %s21, 0
    %p43 = por %p41, %p42
    %s44 = ssub.s32 %s15, %s22
    %p45 = scmp.eq.s32.totalorder %s44, 0
    %s47 = sadd.s32 %s46, 1
    %s48 = scalar_select %p45, %s46, %s47
    %p51 = pneg %p45
    %p52 = scmp.eq.s32.totalorder %s15, 1
    %p53 = por %p51, %p52
    %p54 = scmp.ne.s32.totalorder %s46, %s49
    %p55 = scmp.eq.s32.totalorder %s15, 0
    %p56 = por %p54, %p55
    %p57 = scmp.ne.s32.totalorder %s46, %s49
    %p58 = scmp.eq.s32.totalorder %s20, 1
    %p59 = por %p57, %p58
    %p60 = scmp.ne.s32.totalorder %s49, %s50
    %p61 = scmp.eq.s32.totalorder %s20, 0
    %p62 = por %p60, %p61
    %p63 = scmp.ne.s32.totalorder %s49, %s50
    %p64 = scmp.eq.s32.totalorder %s21, 1
    %p65 = por %p63, %p64
    %p67 = scmp.ne.s32.totalorder %s50, %s66
    %p68 = scmp.eq.s32.totalorder %s21, 0
    %p69 = por %p67, %p68
    %s71 = sadd.s32 %s70, 1
    %p74 = scmp.eq.s32.totalorder %s15, 1
    %p75 = scmp.ne.s32.totalorder %s70, %s72
    %p76 = scmp.eq.s32.totalorder %s15, 0
    %p77 = por %p75, %p76
    %p78 = scmp.ne.s32.totalorder %s70, %s72
    %p79 = scmp.eq.s32.totalorder %s20, 1
    %p80 = por %p78, %p79
    %p81 = scmp.ne.s32.totalorder %s72, %s73
    %p82 = scmp.eq.s32.totalorder %s20, 0
    %p83 = por %p81, %p82
    %p84 = scmp.ne.s32.totalorder %s72, %s73
    %p85 = scmp.eq.s32.totalorder %s21, 1
    %p86 = por %p84, %p85
    %p88 = scmp.ne.s32.totalorder %s73, %s87
    %p89 = scmp.eq.s32.totalorder %s21, 0
    %p90 = por %p88, %p89
    %s92 = sadd.s32 %s91, 1
    %p95 = scmp.eq.s32.totalorder %s15, 1
    %p96 = scmp.ne.s32.totalorder %s91, %s93
    %p97 = scmp.eq.s32.totalorder %s15, 0
    %p98 = por %p96, %p97
    %p99 = scmp.ne.s32.totalorder %s91, %s93
    %p100 = scmp.eq.s32.totalorder %s20, 1
    %p101 = por %p99, %p100
    %p102 = scmp.ne.s32.totalorder %s93, %s94
    %p103 = scmp.eq.s32.totalorder %s20, 0
    %p104 = por %p102, %p103
    %p105 = scmp.ne.s32.totalorder %s93, %s94
    %p106 = scmp.eq.s32.totalorder %s21, 1
    %p107 = por %p105, %p106
    %p109 = scmp.ne.s32.totalorder %s94, %s108
    %p110 = scmp.eq.s32.totalorder %s21, 0
    %p111 = por %p109, %p110
    %s113 = sadd.s32 %s112, 1
    %p116 = scmp.eq.s32.totalorder %s15, 1
    %p117 = scmp.ne.s32.totalorder %s112, %s114
    %p118 = scmp.eq.s32.totalorder %s15, 0
    %p119 = por %p117, %p118
    %p120 = scmp.ne.s32.totalorder %s112, %s114
    %p121 = scmp.eq.s32.totalorder %s20, 1
    %p122 = por %p120, %p121
    %p123 = scmp.ne.s32.totalorder %s114, %s115
    %p124 = scmp.eq.s32.totalorder %s20, 0
    %p125 = por %p123, %p124
    %p126 = scmp.ne.s32.totalorder %s114, %s115
    %p127 = scmp.eq.s32.totalorder %s21, 1
    %p128 = por %p126, %p127
    %p130 = scmp.ne.s32.totalorder %s115, %s129
    %p131 = scmp.eq.s32.totalorder %s21, 0
    %p132 = por %p130, %p131
    %s134 = sadd.s32 %s133, 1
    %p137 = scmp.eq.s32.totalorder %s15, 1
    %p138 = scmp.ne.s32.totalorder %s133, %s135
    %p139 = scmp.eq.s32.totalorder %s15, 0
    %p140 = por %p138, %p139
    %p141 = scmp.ne.s32.totalorder %s133, %s135
    %p142 = scmp.eq.s32.totalorder %s20, 1
    %p143 = por %p141, %p142
    %p144 = scmp.ne.s32.totalorder %s135, %s136
    %p145 = scmp.eq.s32.totalorder %s20, 0
    %p146 = por %p144, %p145
    %p147 = scmp.ne.s32.totalorder %s135, %s136
    %p148 = scmp.eq.s32.totalorder %s21, 1
    %p149 = por %p147, %p148
    %p151 = scmp.ne.s32.totalorder %s136, %s150
    %p152 = scmp.eq.s32.totalorder %s21, 0
    %p153 = por %p151, %p152
    %s155 = sadd.s32 %s154, 1
    %p158 = scmp.eq.s32.totalorder %s15, 1
    %p159 = scmp.ne.s32.totalorder %s154, %s156
    %p160 = scmp.eq.s32.totalorder %s15, 0
    %p161 = por %p159, %p160
    %p162 = scmp.ne.s32.totalorder %s154, %s156
    %p163 = scmp.eq.s32.totalorder %s20, 1
    %p164 = por %p162, %p163
    %p165 = scmp.ne.s32.totalorder %s156, %s157
    %p166 = scmp.eq.s32.totalorder %s20, 0
    %p167 = por %p165, %p166
    %p168 = scmp.ne.s32.totalorder %s156, %s157
    %p169 = scmp.eq.s32.totalorder %s21, 1
    %p170 = por %p168, %p169
    %p172 = scmp.ne.s32.totalorder %s157, %s171
    %p173 = scmp.eq.s32.totalorder %s21, 0
    %p174 = por %p172, %p173
    %s176 = sadd.s32 %s175, 1
    %p179 = scmp.eq.s32.totalorder %s15, 1
    %p180 = scmp.ne.s32.totalorder %s175, %s177
    %p181 = scmp.eq.s32.totalorder %s15, 0
    %p182 = por %p180, %p181
    %p183 = scmp.ne.s32.totalorder %s175, %s177
    %p184 = scmp.eq.s32.totalorder %s20, 1
    %p185 = por %p183, %p184
    %p186 = scmp.ne.s32.totalorder %s177, %s178
    %p187 = scmp.eq.s32.totalorder %s20, 0
    %p188 = por %p186, %p187
    %p189 = scmp.ne.s32.totalorder %s177, %s178
    %p190 = scmp.eq.s32.totalorder %s21, 1
    %p191 = por %p189, %p190
    %p193 = scmp.ne.s32.totalorder %s178, %s192
    %p194 = scmp.eq.s32.totalorder %s21, 0
    %p195 = por %p193, %p194
    %s196 = ssub.s32 %s15, %s22
    %p197 = scmp.eq.s32.totalorder %s196, 0
    %s199 = sadd.s32 %s198, 1
    %s200 = scalar_select %p197, %s198, %s199
    %p203 = pneg %p197
    %p204 = scmp.eq.s32.totalorder %s15, 1
    %p205 = por %p203, %p204
    %p206 = scmp.ne.s32.totalorder %s198, %s201
    %p207 = scmp.eq.s32.totalorder %s15, 0
    %p208 = por %p206, %p207
    %p209 = scmp.ne.s32.totalorder %s198, %s201
    %p210 = scmp.eq.s32.totalorder %s20, 1
    %p211 = por %p209, %p210
    %p212 = scmp.ne.s32.totalorder %s201, %s202
    %p213 = scmp.eq.s32.totalorder %s20, 0
    %p214 = por %p212, %p213
    %p215 = scmp.ne.s32.totalorder %s201, %s202
    %p216 = scmp.eq.s32.totalorder %s21, 1
    %p217 = por %p215, %p216
    %p219 = scmp.ne.s32.totalorder %s202, %s218
    %p220 = scmp.eq.s32.totalorder %s21, 0
    %p221 = por %p219, %p220
    %p222 = scmp.le.s32.totalorder 1, %s15
    %p223 = scmp.lt.s32.totalorder %s15, 3
    %p224 = pnand %p222, %p223
    %p225 = pneg %p224
    // Predicated region
    $region9: #{tpu_custom_call.1} parent=5 // pred_check
      _
    $region10: #{tpu_custom_call.1} parent=5 // pred_check_branch
      %227 = sbr.rel (%p224) target = $region12
    $region11: #{tpu_custom_call.1} parent=5 // pred_region
      %s228 = ssub.s32 %s15, 1
      // Predicated region
      $region13: #{tpu_custom_call.1} parent=11 // pred_check
        %p229 = pneg %p36
      $region14: #{tpu_custom_call.1} parent=11 // pred_check_branch
        %231 = sbr.rel (%p229) target = $region16
      $region15: #{tpu_custom_call.1} parent=11 // pred_region
        _
      $region16: #{tpu_custom_call.1} parent=11 // pred_fallthru
        _
      // Predicated region
      $region17: #{tpu_custom_call.1} parent=11 // pred_check
        %p232 = pneg %p83
      $region18: #{tpu_custom_call.1} parent=11 // pred_check_branch
        %234 = sbr.rel (%p232) target = $region20
      $region19: #{tpu_custom_call.1} parent=11 // pred_region
        _
      $region20: #{tpu_custom_call.1} parent=11 // pred_fallthru
        _
      // Predicated region
      $region21: #{tpu_custom_call.1} parent=11 // pred_check
        %p235 = pneg %p104
      $region22: #{tpu_custom_call.1} parent=11 // pred_check_branch
        %237 = sbr.rel (%p235) target = $region24
      $region23: #{tpu_custom_call.1} parent=11 // pred_region
        _
      $region24: #{tpu_custom_call.1} parent=11 // pred_fallthru
        _
      // Predicated region
      $region25: #{tpu_custom_call.1} parent=11 // pred_check
        %p238 = pneg %p125
      $region26: #{tpu_custom_call.1} parent=11 // pred_check_branch
        %240 = sbr.rel (%p238) target = $region28
      $region27: #{tpu_custom_call.1} parent=11 // pred_region
        _
      $region28: #{tpu_custom_call.1} parent=11 // pred_fallthru
        _
      // Predicated region
      $region29: #{tpu_custom_call.1} parent=11 // pred_check
        %p241 = pneg %p146
      $region30: #{tpu_custom_call.1} parent=11 // pred_check_branch
        %243 = sbr.rel (%p241) target = $region32
      $region31: #{tpu_custom_call.1} parent=11 // pred_region
        _
      $region32: #{tpu_custom_call.1} parent=11 // pred_fallthru
        _
      // Predicated region
      $region33: #{tpu_custom_call.1} parent=11 // pred_check
        %p244 = pneg %p167
      $region34: #{tpu_custom_call.1} parent=11 // pred_check_branch
        %246 = sbr.rel (%p244) target = $region36
      $region35: #{tpu_custom_call.1} parent=11 // pred_region
        _
      $region36: #{tpu_custom_call.1} parent=11 // pred_fallthru
        _
      // Predicated region
      $region37: #{tpu_custom_call.1} parent=11 // pred_check
        %p247 = pneg %p188
      $region38: #{tpu_custom_call.1} parent=11 // pred_check_branch
        %249 = sbr.rel (%p247) target = $region40
      $region39: #{tpu_custom_call.1} parent=11 // pred_region
        _
      $region40: #{tpu_custom_call.1} parent=11 // pred_fallthru
        _
    $region12: #{tpu_custom_call.1} parent=5 // pred_fallthru
      _
    %p250 = scmp.lt.s32.totalorder %s15, 2
    // Predicated region
    $region41: #{tpu_custom_call.1} parent=5 // pred_check
      %p251 = pneg %p250
    $region42: #{tpu_custom_call.1} parent=5 // pred_check_branch
      %253 = sbr.rel (%p251) target = $region44
    $region43: #{tpu_custom_call.1} parent=5 // pred_region
      // Predicated region
      $region45: #{tpu_custom_call.1} parent=43 // pred_check
        %p254 = pneg %p56
      $region46: #{tpu_custom_call.1} parent=43 // pred_check_branch
        %256 = sbr.rel (%p254) target = $region48
      $region47: #{tpu_custom_call.1} parent=43 // pred_region
        %p257 = scmp.lt.s32.totalorder %s15, 1
        %s258 = scalar_select %p257, %s15, 1
        %s259 = smul.addr %s258, 8
        %s260 = scalar_lea.vmem %s1, %s259
      $region48: #{tpu_custom_call.1} parent=43 // pred_fallthru
        _
    $region44: #{tpu_custom_call.1} parent=5 // pred_fallthru
      _
    %p261 = scmp.le.s32.totalorder 1, %s15
    %p262 = scmp.lt.s32.totalorder %s15, 3
    %p263 = pnand %p261, %p262
    %p264 = pneg %p263
    // Predicated region
    $region49: #{tpu_custom_call.1} parent=5 // pred_check
      _
    $region50: #{tpu_custom_call.1} parent=5 // pred_check_branch
      %266 = sbr.rel (%p263) target = $region52
    $region51: #{tpu_custom_call.1} parent=5 // pred_region
      %s267 = ssub.s32 %s15, 1
      %p268 = pneg %p36
      %p269 = pneg %p33
      %p270 = scmp.lt.s32.totalorder %s20, 1
      %s271 = scalar_select %p270, %s20, 1
      %s272 = smul.addr %s271, 8
      %s273 = scalar_lea.vmem %s1, %s272
      %p274 = pneg %p62
      %p275 = pneg %p59
      %p276 = pneg %p83
      %p277 = pneg %p80
      %p278 = pneg %p104
      %p279 = pneg %p101
      %p280 = pneg %p125
      %p281 = pneg %p122
      %p282 = pneg %p146
      %p283 = pneg %p143
      %p284 = pneg %p167
      %p285 = pneg %p164
      %p286 = pneg %p188
      %p287 = pneg %p185
      %p288 = pneg %p214
      %p289 = pneg %p211
      %p290 = scmp.lt.s32.totalorder %s20, 1
      %s291 = scalar_select %p290, %s20, 1
      %s292 = smul.addr %s291, 8
      %s293 = scalar_lea.vmem %s8, %s292
      %p294 = scmp.lt.s32.totalorder %s20, 1
      %s295 = scalar_select %p294, %s20, 1
      %s296 = smul.addr %s295, 8
      %s297 = scalar_lea.vmem %s1, %s296
      %p298 = scmp.lt.s32.totalorder %s20, 1
      %s299 = scalar_select %p298, %s20, 1
      %s300 = smul.addr %s299, 8
      %s301 = scalar_lea.vmem %s8, %s300
      %s302 = sld [smem:[#allocation2]]
      %v303 = vld [vmem:[%s297] sm:$0xff]
      %v304 = vld [vmem:[%s2] sm:$0xf]
      %306 = vset.pattern.permute.xlu0 0
      %307 = vperm.xlu0 %306, %v303
      %v308 = vpop.permute.xlu0 %307
      %v310 = vlaneseq
      %v311 = vshrl.u32 %v310, 7
      %v312 = vsub.s32 0, %v311
      %v313 = vrot.slane %v304, %v312
      %v314 = vmul.f32 %v308, %v313
      %315 = vset.pattern.permute.xlu0 1
      %316 = vperm.xlu0 %315, %v303
      %v317 = vpop.permute.xlu0 %316
      %v319 = vlaneseq
      %v320 = vshrl.u32 %v319, 7
      %v321 = vsub.s32 1, %v320
      %v322 = vrot.slane %v304, %v321
      %v323 = vmul.f32 %v317, %v322
      %v324 = vadd.f32 %v314, %v323
      %325 = vset.pattern.permute.xlu0 2
      %326 = vperm.xlu0 %325, %v303
      %v327 = vpop.permute.xlu0 %326
      %v329 = vlaneseq
      %v330 = vshrl.u32 %v329, 7
      %v331 = vsub.s32 2, %v330
      %v332 = vrot.slane %v304, %v331
      %v333 = vmul.f32 %v327, %v332
      %v334 = vadd.f32 %v324, %v333
      %335 = vset.pattern.permute.xlu0 3
      %336 = vperm.xlu0 %335, %v303
      %v337 = vpop.permute.xlu0 %336
      %v339 = vlaneseq
      %v340 = vshrl.u32 %v339, 7
      %v341 = vsub.s32 3, %v340
      %v342 = vrot.slane %v304, %v341
      %v343 = vmul.f32 %v337, %v342
      %v344 = vadd.f32 %v334, %v343
      %v345 = vld [vmem:[%s3] sm:$0x1]
      %v347 = vlaneseq
      %v348 = vshrl.u32 %v347, 7
      %v349 = vsub.s32 0, %v348
      %v350 = vrot.slane %v345, %v349
      %v352 = vadd.f32 %v344, %v350
      %vm353 = vcmp.gt.f32.partialorder %v352, 0.0
      %v354 = vstv %s302
      %v355 = vmul.f32 %v354, %v352
      %v356 = vsel %vm353, %v352, %v355
      %v357 = vld [vmem:[%s4] sm:$0xff]
      %v358 = vld [vmem:[%s4 + $0x8] sm:$0xff]
      %v359 = vld [vmem:[%s4 + $0x10] sm:$0xff]
      %v360 = vld [vmem:[%s4 + $0x18] sm:$0xff]
      %v361 = vld [vmem:[%s4 + $0x20] sm:$0xff]
      %v362 = vld [vmem:[%s4 + $0x28] sm:$0xff]
      %v363 = vld [vmem:[%s4 + $0x30] sm:$0x3]
      %v364 = vld [vmem:[%s5] sm:$0x1]
      %v366 = vlaneseq
      %v367 = vshrl.u32 %v366, 7
      %v368 = vsub.s32 0, %v367
      %v369 = vrot.slane %v364, %v368
      %vm371 = vcmask 408576
      %v373 = vsel %vm371, %v356, 0
      %vm375 = vcmask 1041408
      %v377 = vsel %vm375, %v363, 0
      %379 = vmatprep.subr.mxu0 0.0
      %380 = vmatpush1.msra.mxu0 %v357
      %381 = vmatprep.subr.mxu0 0.0
      %382 = vmatpush1.msra.mxu0 %v358
      %383 = vmatprep.subr.mxu0 0.0
      %384 = vmatpush1.msra.mxu0 %v359
      %385 = vmatprep.subr.mxu0 0.0
      %386 = vmatpush1.msra.mxu0 %v360
      %387 = vmatprep.subr.mxu0 0.0
      %388 = vmatpush1.msra.mxu0 %v361
      %389 = vmatprep.subr.mxu0 0.0
      %390 = vmatpush1.msra.mxu0 %v362
      %391 = vmatprep.subr.mxu0 0.0
      %392 = vmatpush1.msra.mxu0 %v377
      %393 = vmatprep.subr.mxu0 0.0
      %394 = vmatpush1.msra.mxu0 0.0
      %395 = vmatprep.subr.mxu0 0.0
      %396 = vmatpush1.msra.mxu0 0.0
      %397 = vmatprep.subr.mxu0 0.0
      %398 = vmatpush1.msra.mxu0 0.0
      %399 = vmatprep.subr.mxu0 0.0
      %400 = vmatpush1.msra.mxu0 0.0
      %401 = vmatprep.subr.mxu0 0.0
      %402 = vmatpush1.msra.mxu0 0.0
      %403 = vmatprep.subr.mxu0 0.0
      %404 = vmatpush1.msra.mxu0 0.0
      %405 = vmatprep.subr.mxu0 0.0
      %406 = vmatpush1.msra.mxu0 0.0
      %407 = vmatprep.subr.mxu0 0.0
      %408 = vmatpush1.msra.mxu0 0.0
      %409 = vmatprep.subr.mxu0 0.0
      %410 = vmatpush1.msra.mxu0 0.0
      %411 = vmatprep.subr.mxu0 0.0
      %412 = vmatpush1.msra.mxu0 0.0
      %413 = vmatprep.subr.mxu0 0.0
      %414 = vmatpush1.msra.mxu0 0.0
      %415 = vmatprep.subr.mxu0 0.0
      %416 = vmatpush1.msra.mxu0 0.0
      %417 = vmatprep.subr.mxu0 0.0
      %418 = vmatpush1.msra.mxu0 0.0
      %419 = vmatprep.subr.mxu0 0.0
      %420 = vmatpush1.msra.mxu0 0.0
      %421 = vmatprep.subr.mxu0 0.0
      %422 = vmatpush1.msra.mxu0 0.0
      %423 = vmatprep.subr.mxu0 0.0
      %424 = vmatpush1.msra.mxu0 0.0
      %425 = vmatprep.subr.mxu0 0.0
      %426 = vmatpush1.msra.mxu0 0.0
      %427 = vmatprep.subr.mxu0 0.0
      %428 = vmatpush1.msra.mxu0 0.0
      %429 = vmatprep.subr.mxu0 0.0
      %430 = vmatpush1.msra.mxu0 0.0
      %431 = vmatprep.subr.mxu0 0.0
      %432 = vmatpush1.msra.mxu0 0.0
      %433 = vmatprep.subr.mxu0 0.0
      %434 = vmatpush1.msra.mxu0 0.0
      %435 = vmatprep.subr.mxu0 0.0
      %436 = vmatpush1.msra.mxu0 0.0
      %437 = vmatprep.subr.mxu0 0.0
      %438 = vmatpush1.msra.mxu0 0.0
      %439 = vmatprep.subr.mxu0 0.0
      %440 = vmatpush1.msra.mxu0 0.0
      %441 = vmatprep.subr.mxu0 0.0
      %442 = vmatpush1.msra.mxu0 0.0
      %443 = vmatprep.mubr.f32.mxu0 0.0
      %444 = vmatmul.mubr.f32.gmra.mrb[0].mxu0 %v373
      %v445 = vpop.f32.mrb[0].mxu0
      %v446 = vadd.f32 %v369, %v445
      %v447 = vpop.f32.mrb[0].mxu0
      %448 = vdwg.mxu0
      %vm449 = vcmp.gt.f32.partialorder %v446, 0.0
      %v450 = vmul.f32 %v354, %v446
      %v451 = vsel %vm449, %v446, %v450
      %v452 = vld [vmem:[%s6] sm:$0xff]
      %v453 = vld [vmem:[%s6 + $0x8] sm:$0xff]
      %v454 = vld [vmem:[%s6 + $0x10] sm:$0xff]
      %v455 = vld [vmem:[%s6 + $0x18] sm:$0xff]
      %v456 = vld [vmem:[%s6 + $0x20] sm:$0xff]
      %v457 = vld [vmem:[%s6 + $0x28] sm:$0xff]
      %v458 = vld [vmem:[%s6 + $0x30] sm:$0xff]
      %v459 = vld [vmem:[%s6 + $0x38] sm:$0xff]
      %v460 = vld [vmem:[%s6 + $0x40] sm:$0xff]
      %v461 = vld [vmem:[%s6 + $0x48] sm:$0xff]
      %v462 = vld [vmem:[%s6 + $0x50] sm:$0xff]
      %v463 = vld [vmem:[%s6 + $0x58] sm:$0xff]
      %v464 = vld [vmem:[%s6 + $0x60] sm:$0xf]
      %v465 = vld [vmem:[%s7] sm:$0x1]
      %v467 = vlaneseq
      %v468 = vshrl.u32 %v467, 7
      %v469 = vsub.s32 0, %v468
      %v470 = vrot.slane %v465, %v469
      %vm472 = vcmask 818176
      %v474 = vsel %vm472, %v451, 0
      %vm476 = vcmask 1043456
      %v478 = vsel %vm476, %v464, 0
      %480 = vmatprep.subr.mxu0 0.0
      %481 = vmatpush1.msra.mxu0 %v452
      %482 = vmatprep.subr.mxu0 0.0
      %483 = vmatpush1.msra.mxu0 %v453
      %484 = vmatprep.subr.mxu0 0.0
      %485 = vmatpush1.msra.mxu0 %v454
      %486 = vmatprep.subr.mxu0 0.0
      %487 = vmatpush1.msra.mxu0 %v455
      %488 = vmatprep.subr.mxu0 0.0
      %489 = vmatpush1.msra.mxu0 %v456
      %490 = vmatprep.subr.mxu0 0.0
      %491 = vmatpush1.msra.mxu0 %v457
      %492 = vmatprep.subr.mxu0 0.0
      %493 = vmatpush1.msra.mxu0 %v458
      %494 = vmatprep.subr.mxu0 0.0
      %495 = vmatpush1.msra.mxu0 %v459
      %496 = vmatprep.subr.mxu0 0.0
      %497 = vmatpush1.msra.mxu0 %v460
      %498 = vmatprep.subr.mxu0 0.0
      %499 = vmatpush1.msra.mxu0 %v461
      %500 = vmatprep.subr.mxu0 0.0
      %501 = vmatpush1.msra.mxu0 %v462
      %502 = vmatprep.subr.mxu0 0.0
      %503 = vmatpush1.msra.mxu0 %v463
      %504 = vmatprep.subr.mxu0 0.0
      %505 = vmatpush1.msra.mxu0 %v478
      %506 = vmatprep.subr.mxu0 0.0
      %507 = vmatpush1.msra.mxu0 0.0
      %508 = vmatprep.subr.mxu0 0.0
      %509 = vmatpush1.msra.mxu0 0.0
      %510 = vmatprep.subr.mxu0 0.0
      %511 = vmatpush1.msra.mxu0 0.0
      %512 = vmatprep.subr.mxu0 0.0
      %513 = vmatpush1.msra.mxu0 0.0
      %514 = vmatprep.subr.mxu0 0.0
      %515 = vmatpush1.msra.mxu0 0.0
      %516 = vmatprep.subr.mxu0 0.0
      %517 = vmatpush1.msra.mxu0 0.0
      %518 = vmatprep.subr.mxu0 0.0
      %519 = vmatpush1.msra.mxu0 0.0
      %520 = vmatprep.subr.mxu0 0.0
      %521 = vmatpush1.msra.mxu0 0.0
      %522 = vmatprep.subr.mxu0 0.0
      %523 = vmatpush1.msra.mxu0 0.0
      %524 = vmatprep.subr.mxu0 0.0
      %525 = vmatpush1.msra.mxu0 0.0
      %526 = vmatprep.subr.mxu0 0.0
      %527 = vmatpush1.msra.mxu0 0.0
      %528 = vmatprep.subr.mxu0 0.0
      %529 = vmatpush1.msra.mxu0 0.0
      %530 = vmatprep.subr.mxu0 0.0
      %531 = vmatpush1.msra.mxu0 0.0
      %532 = vmatprep.subr.mxu0 0.0
      %533 = vmatpush1.msra.mxu0 0.0
      %534 = vmatprep.subr.mxu0 0.0
      %535 = vmatpush1.msra.mxu0 0.0
      %536 = vmatprep.subr.mxu0 0.0
      %537 = vmatpush1.msra.mxu0 0.0
      %538 = vmatprep.subr.mxu0 0.0
      %539 = vmatpush1.msra.mxu0 0.0
      %540 = vmatprep.subr.mxu0 0.0
      %541 = vmatpush1.msra.mxu0 0.0
      %542 = vmatprep.subr.mxu0 0.0
      %543 = vmatpush1.msra.mxu0 0.0
      %544 = vmatprep.mubr.f32.mxu0 0.0
      %545 = vmatmul.mubr.f32.gmra.mrb[0].mxu0 %v474
      %v546 = vpop.f32.mrb[0].mxu0
      %v547 = vadd.f32 %v470, %v546
      %v548 = vpop.f32.mrb[0].mxu0
      %549 = vdwg.mxu0
      %vm550 = vcmask 15360
      %551 = vst.msk [vmem:[%s301] sm:$0xff] %vm550, %v547
      %p552 = scmp.lt.s32.totalorder %s20, 1
      %s553 = scalar_select %p552, %s20, 1
      %s554 = smul.addr %s553, 8
      %s555 = scalar_lea.vmem %s8, %s554
      // Predicated region
      $region53: #{tpu_custom_call.1} parent=51 // pred_check
        %p556 = pneg %p211
      $region54: #{tpu_custom_call.1} parent=51 // pred_check_branch
        %558 = sbr.rel (%p556) target = $region56
      $region55: #{tpu_custom_call.1} parent=51 // pred_region
        _
      $region56: #{tpu_custom_call.1} parent=51 // pred_fallthru
        _
    $region52: #{tpu_custom_call.1} parent=5 // pred_fallthru
      _
    %p559 = scmp.le.s32.totalorder 2, %s15
    // Predicated region
    $region57: #{tpu_custom_call.1} parent=5 // pred_check
      %p560 = pneg %p559
    $region58: #{tpu_custom_call.1} parent=5 // pred_check_branch
      %562 = sbr.rel (%p560) target = $region60
    $region59: #{tpu_custom_call.1} parent=5 // pred_region
      %s563 = ssub.s32 %s15, 2
      // Predicated region
      $region61: #{tpu_custom_call.1} parent=59 // pred_check
        %p564 = pneg %p217
      $region62: #{tpu_custom_call.1} parent=59 // pred_check_branch
        %566 = sbr.rel (%p564) target = $region64
      $region63: #{tpu_custom_call.1} parent=59 // pred_region
        %p567 = scmp.lt.s32.totalorder %s21, 1
        %s568 = scalar_select %p567, %s21, 1
        %s569 = smul.addr %s568, 8
        %s570 = scalar_lea.vmem %s8, %s569
      $region64: #{tpu_custom_call.1} parent=59 // pred_fallthru
        _
    $region60: #{tpu_custom_call.1} parent=5 // pred_fallthru
      _
  $region6: #{tpu_custom_call.1} parent=0 // loop_footer
    %s19 = sadd.s32 1, %s15
  $region7: #{tpu_custom_call.1} parent=0 // loop_footer_branch
    %14 = sbr.rel target = $region3
  $region8: #{tpu_custom_call.1} parent=0 // loop_exit
    _

</llo_original>
